<compile_context>
chip_gen: v5e
topology: v5e:2x2
jax: 0.10.0
libtpu: 0.0.40
codegen_flags: <defaults>
</compile_context>

<pallas_src>
import jax
import jax.numpy as jnp
from jax.experimental import pallas as pl
from jax.experimental.pallas import tpu as pltpu


TB_MAX = 8192   # batch-tile lanes: multiple of 256 (fills v6e/v7x MXU width)


def _round_up(x, m):
    return ((x + m - 1) // m) * m


def _choose_tb(B, tb_max=TB_MAX):
    """Batch tile (lane) size.

    - multiple of 256 lanes (full v6e/v7x MXU output width, and keeps the
      lane-dense output stores unmasked except on the last ragged tile)
    - small inputs run as a single grid step
    - large inputs get an even tile count so v7x's two TensorCores split the
      "parallel" grid axis evenly (no effect on single-TC v5e/v6e).
    """
    if B <= tb_max:
        return _round_up(max(B, 1), 256)
    num_tiles = -(-B // tb_max)
    if num_tiles % 2:
        num_tiles += 1                     # even split over 2 TCs (v7x)
    return _round_up(-(-B // num_tiles), 256)


def committor_kernel(xT_ref, w1t_ref, b1_ref, w2_ref, o_ref):
    # lin1 on the MXU, transposed orientation:
    #   (n, d) bf16 @ (d, TB) bf16 -> (n, TB) with f32 accumulation.
    # Hidden axis on sublanes, batch on lanes.
    h = jnp.dot(w1t_ref[...], xT_ref[...], preferred_element_type=jnp.float32)
    # f32 epilogue on the VPU: bias + relu; (n,1) columns lane-broadcast.
    h = jnp.maximum(h + b1_ref[...], 0.0)                      # (n, TB)
    # lin2 (n -> 1, no bias): per-hidden-row scale by w2, then a sublane (XLU)
    # reduction folds the hidden axis -> lane-dense (1, TB) output row.
    y = jnp.sum(h * w2_ref[...], axis=0, keepdims=True)        # (1, TB)
    o_ref[...] = y.astype(o_ref.dtype)
    # TODO(synk): a non-None `thresh` would be a one-line elementwise epilogue
    # on `y` here; the reference config uses thresh=None (identity).


def prepare_params(lin1_w, lin1_b, lin2_w):
    """One-time (per parameter update) repack into the kernel layout.

    lin1_w: (n, d)  torch lin1.weight
    lin1_b: (n,)    torch lin1.bias
    lin2_w: (1, n)  torch lin2.weight
    Returns (w1t bf16 (n_pad, d), b1 col f32 (n_pad, 1), w2 col f32 (n_pad, 1)).
    Zero-padded hidden rows are exact: relu(0 + 0) * 0 contributes 0.
    """
    n, d = lin1_w.shape
    n_pad = _round_up(n, 8)                       # sublane multiple only
    w1t = (jnp.zeros((n_pad, d), jnp.float32)
           .at[:n].set(lin1_w.astype(jnp.float32)).astype(jnp.bfloat16))
    b1c = jnp.zeros((n_pad, 1), jnp.float32).at[:n, 0].set(
        lin1_b.astype(jnp.float32))
    w2c = jnp.zeros((n_pad, 1), jnp.float32).at[:n, 0].set(
        lin2_w.reshape(n).astype(jnp.float32))
    return w1t, b1c, w2c


def committor_forward(x, params, *, tb_max=TB_MAX):
    """Fused CommittorNet forward: relu(x @ W1.T + b1) @ W2.T -> (B, 1) f32."""
    w1t, b1c, w2c = params
    n_pad, d = w1t.shape
    x2d = x.reshape(-1, d)
    B = x2d.shape[0]

    tb = _choose_tb(B, tb_max)
    num_tiles = pl.cdiv(B, tb)

    # Single fused pass over x: transpose to (d, B) (batch lane-dense) + bf16
    # cast.  No batch zero-pad: the ragged last block's garbage columns are
    # clipped by the bounded output DMA and never written to HBM.
    xT = x2d.T.astype(jnp.bfloat16)                       # (d, B)

    cost = pl.CostEstimate(
        flops=2 * B * n_pad * d + 4 * B * n_pad,
        transcendentals=0,
        bytes_accessed=2 * d * B + 4 * B + 2 * n_pad * d + 8 * n_pad,
    )

    out = pl.pallas_call(
        committor_kernel,
        out_shape=jax.ShapeDtypeStruct((1, B), jnp.float32),
        grid_spec=pl.GridSpec(
            grid=(num_tiles,),
            in_specs=[
                pl.BlockSpec((d, tb), lambda i: (0, i)),       # x tile streams
                pl.BlockSpec((n_pad, d), lambda i: (0, 0)),    # weights resident
                pl.BlockSpec((n_pad, 1), lambda i: (0, 0)),
                pl.BlockSpec((n_pad, 1), lambda i: (0, 0)),
            ],
            out_specs=pl.BlockSpec((1, tb), lambda i: (0, i)),
        ),
        compiler_params=pltpu.CompilerParams(
            # v7x: shard batch tiles over both TensorCores; harmless on v5e/v6e.
            dimension_semantics=("parallel",),
        ),
        cost_estimate=cost,
    )(xT, w1t, b1c, w2c)

    # (1, B) lane-dense row -> (B, 1); row-major reshape, no data movement.
    return out.reshape(B, 1)


def init_params(key, d, n, init_mode="meanfield"):
    """Deterministic synthetic init matching CommittorNet.__init__.

    lin1.weight: (n, d), lin1.bias: (n,)  -> PyTorch default uniform(+-1/sqrt(d))
    lin2.weight: (1, n)                   -> meanfield: randn / n
    renormalize(): lin1.weight rows scaled to unit L2 norm.
    """
    k1, k2, k3 = jax.random.split(key, 3)
    bound = 1.0 / jnp.sqrt(jnp.float32(d))
    lin1_w = jax.random.uniform(k1, (n, d), jnp.float32, -bound, bound)
    lin1_b = jax.random.uniform(k2, (n,), jnp.float32, -bound, bound)
    lin2_w = jax.random.normal(k3, (1, n), jnp.float32)

    if init_mode == "meanfield":
        lin2_w = lin2_w / n
        row_norm = jnp.linalg.norm(lin1_w, axis=1, keepdims=True)
        lin1_w = lin1_w / row_norm

    return lin1_w, lin1_b, lin2_w


if __name__ == "__main__":
    d = 8      # input feature dim
    n = 32     # hidden width
    key = jax.random.PRNGKey(0)
    kx, kp = jax.random.split(key)
    # extra leading dims flattened by .view(-1, d): (4, 300, 8) -> (1200, 8)
    # (B=1200 is not a multiple of 256 -> exercises the ragged last block)
    x = jax.random.normal(kx, (4, 300, d), jnp.float32)

    lin1_w, lin1_b, lin2_w = init_params(kp, d, n, init_mode="meanfield")
    params = prepare_params(lin1_w, lin1_b, lin2_w)   # hoisted: once per update

    fwd = jax.jit(committor_forward)
    out = jax.block_until_ready(fwd(x, params))

    # reference in plain JAX, with the same bf16 rounding of x and W1
    x2d = x.reshape(-1, d)
    xb = x2d.astype(jnp.bfloat16).astype(jnp.float32)
    w1b = params[0][:n].astype(jnp.float32)           # bf16-rounded (n, d)
    h_ref = jnp.maximum(
        jnp.dot(xb, w1b.T, precision=jax.lax.Precision.HIGHEST)
        + lin1_b[None, :], 0.0)
    ref = jnp.dot(h_ref, lin2_w.T, precision=jax.lax.Precision.HIGHEST)

    assert out.shape == (x2d.shape[0], 1), out.shape
    max_err = float(jnp.max(jnp.abs(out - ref)))
    assert jnp.allclose(out, ref, atol=1e-4, rtol=1e-4), max_err

    print("KERNEL_OK")
</pallas_src>

<mosaic_0001>
module attributes {stable_mosaic.version = 11 : i64} {
  func.func @committor_kernel(%arg0: i32, %arg1: memref<8x1280xbf16, #tpu.memory_space<vmem>>, %arg2: memref<32x8xbf16, #tpu.memory_space<vmem>>, %arg3: memref<32x1xf32, #tpu.memory_space<vmem>>, %arg4: memref<32x1xf32, #tpu.memory_space<vmem>>, %arg5: memref<1x1280xf32, #tpu.memory_space<vmem>>) attributes {dimension_semantics = [#tpu.dimension_semantics<parallel>], iteration_bounds = array<i64: 1>, scalar_prefetch = 0 : i64, scratch_operands = 0 : i64, tpu.core_type = #tpu.core_type<tc>, window_params = [{transform_indices = @transform_0, window_bounds = array<i64: 8, 1280>}, {pipeline_mode = #tpu.pipeline_mode<synchronous>, transform_indices = @transform_1, window_bounds = array<i64: 32, 8>}, {pipeline_mode = #tpu.pipeline_mode<synchronous>, transform_indices = @transform_2, window_bounds = array<i64: 32, 1>}, {pipeline_mode = #tpu.pipeline_mode<synchronous>, transform_indices = @transform_3, window_bounds = array<i64: 32, 1>}, {transform_indices = @transform_4, window_bounds = array<i64: 1, 1280>}]} {
    %c0 = arith.constant 0 : index
    %c0_0 = arith.constant 0 : index
    %0 = vector.load %arg2[%c0, %c0_0] : memref<32x8xbf16, #tpu.memory_space<vmem>>, vector<32x8xbf16>
    %c0_1 = arith.constant 0 : index
    %c0_2 = arith.constant 0 : index
    %1 = vector.load %arg1[%c0_1, %c0_2] : memref<8x1280xbf16, #tpu.memory_space<vmem>>, vector<8x1280xbf16>
    %cst = arith.constant dense<0.000000e+00> : vector<32x1280xf32>
    %2 = tpu.matmul %0, %1, %cst {dimension_numbers = #tpu.dot_dimension_numbers<[1], [0], [0], [1], [0, 0, 1, 1], [], []>} : vector<32x8xbf16>, vector<8x1280xbf16>, vector<32x1280xf32> -> vector<32x1280xf32>
    %c0_3 = arith.constant 0 : index
    %c0_4 = arith.constant 0 : index
    %3 = vector.load %arg3[%c0_3, %c0_4] : memref<32x1xf32, #tpu.memory_space<vmem>>, vector<32x1xf32>
    %4 = vector.broadcast %3 : vector<32x1xf32> to vector<32x1280xf32>
    %5 = arith.addf %2, %4 : vector<32x1280xf32>
    %cst_5 = arith.constant 0.000000e+00 : f32
    %6 = vector.broadcast %cst_5 : f32 to vector<32x1280xf32>
    %7 = arith.maximumf %5, %6 : vector<32x1280xf32>
    %c0_6 = arith.constant 0 : index
    %c0_7 = arith.constant 0 : index
    %8 = vector.load %arg4[%c0_6, %c0_7] : memref<32x1xf32, #tpu.memory_space<vmem>>, vector<32x1xf32>
    %9 = vector.broadcast %8 : vector<32x1xf32> to vector<32x1280xf32>
    %10 = arith.mulf %7, %9 : vector<32x1280xf32>
    %cst_8 = arith.constant dense<0.000000e+00> : vector<1280xf32>
    %11 = vector.multi_reduction <add>, %10, %cst_8 [0] : vector<32x1280xf32> to vector<1280xf32>
    %12 = vector.shape_cast %11 : vector<1280xf32> to vector<1x1280xf32>
    %c0_9 = arith.constant 0 : index
    %c0_10 = arith.constant 0 : index
    %13 = vector.load %arg5[%c0_9, %c0_10] : memref<1x1280xf32, #tpu.memory_space<vmem>>, vector<1x1280xf32>
    tpu.vector_store %arg5[%c0_9, %c0_10], %12 {strides = array<i32>} : memref<1x1280xf32, #tpu.memory_space<vmem>>, vector<1x1280xf32>,
    return
  }
  func.func @transform_0(%arg0: i32) -> (i32, i32) {
    %c0_i32 = arith.constant 0 : i32
    %c0_i32_0 = arith.constant 0 : i32
    return %c0_i32, %arg0 : i32, i32
  }
  func.func @transform_1(%arg0: i32) -> (i32, i32) {
    %c0_i32 = arith.constant 0 : i32
    %c0_i32_0 = arith.constant 0 : i32
    %c0_i32_1 = arith.constant 0 : i32
    return %c0_i32, %c0_i32_0 : i32, i32
  }
  func.func @transform_2(%arg0: i32) -> (i32, i32) {
    %c0_i32 = arith.constant 0 : i32
    %c0_i32_0 = arith.constant 0 : i32
    %c0_i32_1 = arith.constant 0 : i32
    return %c0_i32, %c0_i32_0 : i32, i32
  }
  func.func @transform_3(%arg0: i32) -> (i32, i32) {
    %c0_i32 = arith.constant 0 : i32
    %c0_i32_0 = arith.constant 0 : i32
    %c0_i32_1 = arith.constant 0 : i32
    return %c0_i32, %c0_i32_0 : i32, i32
  }
  func.func @transform_4(%arg0: i32) -> (i32, i32) {
    %c0_i32 = arith.constant 0 : i32
    %c0_i32_0 = arith.constant 0 : i32
    return %c0_i32, %arg0 : i32, i32
  }
}

</mosaic_0001>

<llo_original>
// kernel: committor_forward.1
$region0: #{committor_forward.1}
  #allocation0 [shape = 'u32[]', space=smem, size = 0x4, offset = 0x4, fixed_abs, tag = 'smem constant byte address 0x4 - core index']
  #allocation1 [shape = 'u32[72,128]{1,0:T(1,128)}', space=vmem, size = 0x9000, scoped, tag = 'internal scratch']
  %s0 = inlined_call_operand.vmem [shape: bf16[8,1200], index: 0, kind: input, shape index: {}]
  %s1 = inlined_call_operand.vmem [shape: bf16[32,8], index: 1, kind: input, shape index: {}]
  %s2 = inlined_call_operand.vmem [shape: f32[32,1], index: 2, kind: input, shape index: {}]
  %s3 = inlined_call_operand.vmem [shape: f32[32,1], index: 3, kind: input, shape index: {}]
  %s4 = inlined_call_operand.hbm [shape: f32[1,1200], index: 4, kind: output, shape index: {}]
  %s5 = sld [smem:[#allocation0]]
  $region26: #{committor_forward.1} parent=0
    _
  %s7 = ssub.s32 1, %s5
  %s8 = scalar_select 0, %s7, %s5
  $region1: #{committor_forward.1} parent=0
    #allocation2 [shape = 'u8[5120]{0}', space=vmem, size = 0x1400, scoped, tag = 'output window, operand 0, single buffered']
    #allocation3 [shape = 's32[1]{0}', space=sflag, size = 0x4, scoped, tag = 'scoped memory for committor_forward.1']
    %9 = vsyncpa [#allocation3], 0
    // Predicated region
    $region2: #{committor_forward.1} parent=1 // pred_check
      _
    $region3: #{committor_forward.1} parent=1 // pred_check_branch
      %11 = sbr.rel (0) target = $region5
    $region4: #{committor_forward.1} parent=1 // pred_region
      _
    $region5: #{committor_forward.1} parent=1 // pred_fallthru
      _
    // Predicated region
    $region6: #{committor_forward.1} parent=1 // pred_check
      _
    $region7: #{committor_forward.1} parent=1 // pred_check_branch
      %13 = sbr.rel (0) target = $region9
    $region8: #{committor_forward.1} parent=1 // pred_region
      _
    $region9: #{committor_forward.1} parent=1 // pred_fallthru
      _
    // Predicated region
    $region10: #{committor_forward.1} parent=1 // pred_check
      _
    $region11: #{committor_forward.1} parent=1 // pred_check_branch
      %15 = sbr.rel (0) target = $region13
    $region12: #{committor_forward.1} parent=1 // pred_region
      _
    $region13: #{committor_forward.1} parent=1 // pred_fallthru
      _
    // Predicated region
    $region14: #{committor_forward.1} parent=1 // pred_check
      _
    $region15: #{committor_forward.1} parent=1 // pred_check_branch
      %17 = sbr.rel (0) target = $region17
    $region16: #{committor_forward.1} parent=1 // pred_region
      _
    $region17: #{committor_forward.1} parent=1 // pred_fallthru
      _
    %v19 = vld [vmem:[%s1] sm:$0xf]
    %v20 = vld [vmem:[%s1 + $0x4] sm:$0xf]
    %v21 = vld [vmem:[%s1 + $0x8] sm:$0xf]
    %v22 = vld [vmem:[%s1 + $0xc] sm:$0xf]
    %v23 = vld [vmem:[%s0] sm:$0xff]
    %v24 = vld [vmem:[%s0 + $0x8] sm:$0xff]
    %v25 = vld [vmem:[%s0 + $0x10] sm:$0xff]
    %v26 = vld [vmem:[%s0 + $0x18] sm:$0xff]
    %v27 = vld [vmem:[%s0 + $0x20] sm:$0xff]
    %v28 = vld [vmem:[%s2] sm:$0xff]
    %v29 = vld [vmem:[%s2 + $0x8] sm:$0xff]
    %v30 = vld [vmem:[%s2 + $0x10] sm:$0xff]
    %v31 = vld [vmem:[%s2 + $0x18] sm:$0xff]
    %33 = vset.pattern.permute.xlu0 0
    %34 = vperm.xlu0 %33, %v28
    %v35 = vpop.permute.xlu0 %34
    %38 = vset.pattern.permute.xlu0 0
    %39 = vperm.xlu0 %38, %v29
    %v40 = vpop.permute.xlu0 %39
    %43 = vset.pattern.permute.xlu0 0
    %44 = vperm.xlu0 %43, %v30
    %v45 = vpop.permute.xlu0 %44
    %48 = vset.pattern.permute.xlu0 0
    %49 = vperm.xlu0 %48, %v31
    %v50 = vpop.permute.xlu0 %49
    %v56 = vunpack.c.l.b16 %v19
    %v57 = vunpack.c.l.b16 %v20
    %v58 = vunpack.c.l.b16 %v21
    %v59 = vunpack.c.l.b16 %v22
    %v60 = vpack.c.b16 %v57, %v56
    %v61 = vpack.c.b16 %v59, %v58
    %v67 = vunpack.c.l.b16 %v23
    %v68 = vunpack.c.h.b16 %v23
    %v69 = vunpack.c.l.b16 %v24
    %v70 = vunpack.c.h.b16 %v24
    %v71 = vunpack.c.l.b16 %v25
    %v72 = vunpack.c.h.b16 %v25
    %v73 = vunpack.c.l.b16 %v26
    %v74 = vunpack.c.h.b16 %v26
    %v75 = vunpack.c.l.b16 %v27
    %v76 = vunpack.c.h.b16 %v27
    %v77 = vpack.c.b16 %v67, %v67
    %v78 = vpack.c.b16 %v68, %v68
    %v79 = vpack.c.b16 %v69, %v69
    %v80 = vpack.c.b16 %v70, %v70
    %v81 = vpack.c.b16 %v71, %v71
    %v82 = vpack.c.b16 %v72, %v72
    %v83 = vpack.c.b16 %v73, %v73
    %v84 = vpack.c.b16 %v74, %v74
    %v85 = vpack.c.b16 %v75, %v75
    %v86 = vpack.c.b16 %v76, %v76
    %vm87 = vcmask 64512
    %v89 = vsel %vm87, %v60, 0
    %v92 = vsel %vm87, %v61, 0
    %vm94 = vcmask 1043456
    %v96 = vsel %vm94, %v77, 0
    %v99 = vsel %vm94, %v78, 0
    %v102 = vsel %vm94, %v79, 0
    %v105 = vsel %vm94, %v80, 0
    %v108 = vsel %vm94, %v81, 0
    %v111 = vsel %vm94, %v82, 0
    %v114 = vsel %vm94, %v83, 0
    %v117 = vsel %vm94, %v84, 0
    %v120 = vsel %vm94, %v85, 0
    %v123 = vsel %vm94, %v86, 0
    %125 = vmatpush.bf16.msra.mxu0 0
    %126 = vmatpush.bf16.msra.mxu0 0
    %127 = vmatpush.bf16.msra.mxu0 0
    %128 = vmatpush.bf16.msra.mxu0 0
    %129 = vmatpush.bf16.msra.mxu0 0
    %130 = vmatpush.bf16.msra.mxu0 0
    %131 = vmatpush.bf16.msra.mxu0 0
    %132 = vmatpush.bf16.msra.mxu0 %v96
    %133 = vmatmul.bf16.gmra.mxu0 %v89
    %v134 = vpop.f32.mrf.mxu0
    %v135 = vadd.f32 %v35, %v134
    %v136 = vpop.f32.mrf.mxu0
    %v137 = vadd.f32 %v40, %v136
    %138 = vmatmul.bf16.gmra.mxu0 %v92
    %v139 = vpop.f32.mrf.mxu0
    %v140 = vadd.f32 %v45, %v139
    %v141 = vpop.f32.mrf.mxu0
    %v142 = vadd.f32 %v50, %v141
    %143 = vdwg.mxu0
    %144 = vmatpush.bf16.msra.mxu0 0
    %145 = vmatpush.bf16.msra.mxu0 0
    %146 = vmatpush.bf16.msra.mxu0 0
    %147 = vmatpush.bf16.msra.mxu0 0
    %148 = vmatpush.bf16.msra.mxu0 0
    %149 = vmatpush.bf16.msra.mxu0 0
    %150 = vmatpush.bf16.msra.mxu0 0
    %151 = vmatpush.bf16.msra.mxu0 %v99
    %152 = vmatmul.bf16.gmra.mxu0 %v89
    %v153 = vpop.f32.mrf.mxu0
    %v154 = vadd.f32 %v35, %v153
    %v155 = vpop.f32.mrf.mxu0
    %v156 = vadd.f32 %v40, %v155
    %157 = vmatmul.bf16.gmra.mxu0 %v92
    %v158 = vpop.f32.mrf.mxu0
    %v159 = vadd.f32 %v45, %v158
    %v160 = vpop.f32.mrf.mxu0
    %v161 = vadd.f32 %v50, %v160
    %162 = vdwg.mxu0
    %163 = vmatpush.bf16.msra.mxu0 0
    %164 = vmatpush.bf16.msra.mxu0 0
    %165 = vmatpush.bf16.msra.mxu0 0
    %166 = vmatpush.bf16.msra.mxu0 0
    %167 = vmatpush.bf16.msra.mxu0 0
    %168 = vmatpush.bf16.msra.mxu0 0
    %169 = vmatpush.bf16.msra.mxu0 0
    %170 = vmatpush.bf16.msra.mxu0 %v102
    %171 = vmatmul.bf16.gmra.mxu0 %v89
    %v172 = vpop.f32.mrf.mxu0
    %v173 = vadd.f32 %v35, %v172
    %v174 = vpop.f32.mrf.mxu0
    %v175 = vadd.f32 %v40, %v174
    %176 = vmatmul.bf16.gmra.mxu0 %v92
    %v177 = vpop.f32.mrf.mxu0
    %v178 = vadd.f32 %v45, %v177
    %v179 = vpop.f32.mrf.mxu0
    %v180 = vadd.f32 %v50, %v179
    %181 = vdwg.mxu0
    %182 = vmatpush.bf16.msra.mxu0 0
    %183 = vmatpush.bf16.msra.mxu0 0
    %184 = vmatpush.bf16.msra.mxu0 0
    %185 = vmatpush.bf16.msra.mxu0 0
    %186 = vmatpush.bf16.msra.mxu0 0
    %187 = vmatpush.bf16.msra.mxu0 0
    %188 = vmatpush.bf16.msra.mxu0 0
    %189 = vmatpush.bf16.msra.mxu0 %v105
    %190 = vmatmul.bf16.gmra.mxu0 %v89
    %v191 = vpop.f32.mrf.mxu0
    %v192 = vadd.f32 %v35, %v191
    %v193 = vpop.f32.mrf.mxu0
    %v194 = vadd.f32 %v40, %v193
    %195 = vmatmul.bf16.gmra.mxu0 %v92
    %v196 = vpop.f32.mrf.mxu0
    %v197 = vadd.f32 %v45, %v196
    %v198 = vpop.f32.mrf.mxu0
    %v199 = vadd.f32 %v50, %v198
    %200 = vdwg.mxu0
    %201 = vmatpush.bf16.msra.mxu0 0
    %202 = vmatpush.bf16.msra.mxu0 0
    %203 = vmatpush.bf16.msra.mxu0 0
    %204 = vmatpush.bf16.msra.mxu0 0
    %205 = vmatpush.bf16.msra.mxu0 0
    %206 = vmatpush.bf16.msra.mxu0 0
    %207 = vmatpush.bf16.msra.mxu0 0
    %208 = vmatpush.bf16.msra.mxu0 %v108
    %209 = vmatmul.bf16.gmra.mxu0 %v89
    %v210 = vpop.f32.mrf.mxu0
    %v211 = vadd.f32 %v35, %v210
    %v212 = vpop.f32.mrf.mxu0
    %v213 = vadd.f32 %v40, %v212
    %214 = vmatmul.bf16.gmra.mxu0 %v92
    %v215 = vpop.f32.mrf.mxu0
    %v216 = vadd.f32 %v45, %v215
    %v217 = vpop.f32.mrf.mxu0
    %v218 = vadd.f32 %v50, %v217
    %219 = vdwg.mxu0
    %220 = vmatpush.bf16.msra.mxu0 0
    %221 = vmatpush.bf16.msra.mxu0 0
    %222 = vmatpush.bf16.msra.mxu0 0
    %223 = vmatpush.bf16.msra.mxu0 0
    %224 = vmatpush.bf16.msra.mxu0 0
    %225 = vmatpush.bf16.msra.mxu0 0
    %226 = vmatpush.bf16.msra.mxu0 0
    %227 = vmatpush.bf16.msra.mxu0 %v111
    %228 = vmatmul.bf16.gmra.mxu0 %v89
    %v229 = vpop.f32.mrf.mxu0
    %v230 = vadd.f32 %v35, %v229
    %v231 = vpop.f32.mrf.mxu0
    %v232 = vadd.f32 %v40, %v231
    %233 = vmatmul.bf16.gmra.mxu0 %v92
    %v234 = vpop.f32.mrf.mxu0
    %v235 = vadd.f32 %v45, %v234
    %v236 = vpop.f32.mrf.mxu0
    %v237 = vadd.f32 %v50, %v236
    %238 = vdwg.mxu0
    %239 = vmatpush.bf16.msra.mxu0 0
    %240 = vmatpush.bf16.msra.mxu0 0
    %241 = vmatpush.bf16.msra.mxu0 0
    %242 = vmatpush.bf16.msra.mxu0 0
    %243 = vmatpush.bf16.msra.mxu0 0
    %244 = vmatpush.bf16.msra.mxu0 0
    %245 = vmatpush.bf16.msra.mxu0 0
    %246 = vmatpush.bf16.msra.mxu0 %v114
    %247 = vmatmul.bf16.gmra.mxu0 %v89
    %v248 = vpop.f32.mrf.mxu0
    %v249 = vadd.f32 %v35, %v248
    %v250 = vpop.f32.mrf.mxu0
    %v251 = vadd.f32 %v40, %v250
    %252 = vmatmul.bf16.gmra.mxu0 %v92
    %v253 = vpop.f32.mrf.mxu0
    %v254 = vadd.f32 %v45, %v253
    %v255 = vpop.f32.mrf.mxu0
    %v256 = vadd.f32 %v50, %v255
    %257 = vdwg.mxu0
    %258 = vmatpush.bf16.msra.mxu0 0
    %259 = vmatpush.bf16.msra.mxu0 0
    %260 = vmatpush.bf16.msra.mxu0 0
    %261 = vmatpush.bf16.msra.mxu0 0
    %262 = vmatpush.bf16.msra.mxu0 0
    %263 = vmatpush.bf16.msra.mxu0 0
    %264 = vmatpush.bf16.msra.mxu0 0
    %265 = vmatpush.bf16.msra.mxu0 %v117
    %266 = vmatmul.bf16.gmra.mxu0 %v89
    %v267 = vpop.f32.mrf.mxu0
    %v268 = vadd.f32 %v35, %v267
    %v269 = vpop.f32.mrf.mxu0
    %v270 = vadd.f32 %v40, %v269
    %271 = vmatmul.bf16.gmra.mxu0 %v92
    %v272 = vpop.f32.mrf.mxu0
    %v273 = vadd.f32 %v45, %v272
    %v274 = vpop.f32.mrf.mxu0
    %v275 = vadd.f32 %v50, %v274
    %276 = vdwg.mxu0
    %277 = vmatpush.bf16.msra.mxu0 0
    %278 = vmatpush.bf16.msra.mxu0 0
    %279 = vmatpush.bf16.msra.mxu0 0
    %280 = vmatpush.bf16.msra.mxu0 0
    %281 = vmatpush.bf16.msra.mxu0 0
    %282 = vmatpush.bf16.msra.mxu0 0
    %283 = vmatpush.bf16.msra.mxu0 0
    %284 = vmatpush.bf16.msra.mxu0 %v120
    %285 = vmatmul.bf16.gmra.mxu0 %v89
    %v286 = vpop.f32.mrf.mxu0
    %v287 = vadd.f32 %v35, %v286
    %v288 = vpop.f32.mrf.mxu0
    %v289 = vadd.f32 %v40, %v288
    %290 = vmatmul.bf16.gmra.mxu0 %v92
    %v291 = vpop.f32.mrf.mxu0
    %v292 = vadd.f32 %v45, %v291
    %v293 = vpop.f32.mrf.mxu0
    %v294 = vadd.f32 %v50, %v293
    %295 = vdwg.mxu0
    %296 = vmatpush.bf16.msra.mxu0 0
    %297 = vmatpush.bf16.msra.mxu0 0
    %298 = vmatpush.bf16.msra.mxu0 0
    %299 = vmatpush.bf16.msra.mxu0 0
    %300 = vmatpush.bf16.msra.mxu0 0
    %301 = vmatpush.bf16.msra.mxu0 0
    %302 = vmatpush.bf16.msra.mxu0 0
    %303 = vmatpush.bf16.msra.mxu0 %v123
    %304 = vmatmul.bf16.gmra.mxu0 %v89
    %v305 = vpop.f32.mrf.mxu0
    %v306 = vadd.f32 %v35, %v305
    %v307 = vpop.f32.mrf.mxu0
    %v308 = vadd.f32 %v40, %v307
    %309 = vmatmul.bf16.gmra.mxu0 %v92
    %v310 = vpop.f32.mrf.mxu0
    %v311 = vadd.f32 %v45, %v310
    %v312 = vpop.f32.mrf.mxu0
    %v313 = vadd.f32 %v50, %v312
    %314 = vdwg.mxu0
    %v315 = vmax.f32 %v135, 0.0
    %v316 = vmax.f32 %v154, 0.0
    %v317 = vmax.f32 %v173, 0.0
    %v318 = vmax.f32 %v192, 0.0
    %v319 = vmax.f32 %v211, 0.0
    %v320 = vmax.f32 %v230, 0.0
    %v321 = vmax.f32 %v249, 0.0
    %v322 = vmax.f32 %v268, 0.0
    %v323 = vmax.f32 %v287, 0.0
    %v324 = vmax.f32 %v306, 0.0
    %v325 = vmax.f32 %v137, 0.0
    %v326 = vmax.f32 %v156, 0.0
    %v327 = vmax.f32 %v175, 0.0
    %v328 = vmax.f32 %v194, 0.0
    %v329 = vmax.f32 %v213, 0.0
    %v330 = vmax.f32 %v232, 0.0
    %v331 = vmax.f32 %v251, 0.0
    %v332 = vmax.f32 %v270, 0.0
    %v333 = vmax.f32 %v289, 0.0
    %v334 = vmax.f32 %v308, 0.0
    %v335 = vmax.f32 %v140, 0.0
    %v336 = vmax.f32 %v159, 0.0
    %v337 = vmax.f32 %v178, 0.0
    %v338 = vmax.f32 %v197, 0.0
    %v339 = vmax.f32 %v216, 0.0
    %v340 = vmax.f32 %v235, 0.0
    %v341 = vmax.f32 %v254, 0.0
    %v342 = vmax.f32 %v273, 0.0
    %v343 = vmax.f32 %v292, 0.0
    %v344 = vmax.f32 %v311, 0.0
    %v345 = vmax.f32 %v142, 0.0
    %v346 = vmax.f32 %v161, 0.0
    %v347 = vmax.f32 %v180, 0.0
    %v348 = vmax.f32 %v199, 0.0
    %v349 = vmax.f32 %v218, 0.0
    %v350 = vmax.f32 %v237, 0.0
    %v351 = vmax.f32 %v256, 0.0
    %v352 = vmax.f32 %v275, 0.0
    %v353 = vmax.f32 %v294, 0.0
    %v354 = vmax.f32 %v313, 0.0
    %v355 = vld [vmem:[%s3] sm:$0xff]
    %v356 = vld [vmem:[%s3 + $0x8] sm:$0xff]
    %v357 = vld [vmem:[%s3 + $0x10] sm:$0xff]
    %v358 = vld [vmem:[%s3 + $0x18] sm:$0xff]
    %360 = vset.pattern.permute.xlu0 0
    %361 = vperm.xlu0 %360, %v355
    %v362 = vpop.permute.xlu0 %361
    %365 = vset.pattern.permute.xlu0 0
    %366 = vperm.xlu0 %365, %v356
    %v367 = vpop.permute.xlu0 %366
    %370 = vset.pattern.permute.xlu0 0
    %371 = vperm.xlu0 %370, %v357
    %v372 = vpop.permute.xlu0 %371
    %375 = vset.pattern.permute.xlu0 0
    %376 = vperm.xlu0 %375, %v358
    %v377 = vpop.permute.xlu0 %376
    %v379 = vmul.f32 %v315, %v362
    %v380 = vmul.f32 %v316, %v362
    %v381 = vmul.f32 %v317, %v362
    %v382 = vmul.f32 %v318, %v362
    %v383 = vmul.f32 %v319, %v362
    %v384 = vmul.f32 %v320, %v362
    %v385 = vmul.f32 %v321, %v362
    %v386 = vmul.f32 %v322, %v362
    %v387 = vmul.f32 %v323, %v362
    %v388 = vmul.f32 %v324, %v362
    %v389 = vmul.f32 %v325, %v367
    %v390 = vmul.f32 %v326, %v367
    %v391 = vmul.f32 %v327, %v367
    %v392 = vmul.f32 %v328, %v367
    %v393 = vmul.f32 %v329, %v367
    %v394 = vmul.f32 %v330, %v367
    %v395 = vmul.f32 %v331, %v367
    %v396 = vmul.f32 %v332, %v367
    %v397 = vmul.f32 %v333, %v367
    %v398 = vmul.f32 %v334, %v367
    %v399 = vmul.f32 %v335, %v372
    %v400 = vmul.f32 %v336, %v372
    %v401 = vmul.f32 %v337, %v372
    %v402 = vmul.f32 %v338, %v372
    %v403 = vmul.f32 %v339, %v372
    %v404 = vmul.f32 %v340, %v372
    %v405 = vmul.f32 %v341, %v372
    %v406 = vmul.f32 %v342, %v372
    %v407 = vmul.f32 %v343, %v372
    %v408 = vmul.f32 %v344, %v372
    %v409 = vmul.f32 %v345, %v377
    %v410 = vmul.f32 %v346, %v377
    %v411 = vmul.f32 %v347, %v377
    %v412 = vmul.f32 %v348, %v377
    %v413 = vmul.f32 %v349, %v377
    %v414 = vmul.f32 %v350, %v377
    %v415 = vmul.f32 %v351, %v377
    %v416 = vmul.f32 %v352, %v377
    %v417 = vmul.f32 %v353, %v377
    %v418 = vmul.f32 %v354, %v377
    %v419 = vadd.f32 %v379, %v389
    %v420 = vadd.f32 %v419, %v399
    %v421 = vadd.f32 %v420, %v409
    %v422 = vrot.slane %v421, 4
    %v423 = vadd.f32 %v421, %v422
    %v424 = vrot.slane %v423, 2
    %v425 = vadd.f32 %v423, %v424
    %v426 = vrot.slane %v425, 1
    %v427 = vadd.f32 %v425, %v426
    %v428 = vadd.f32 %v380, %v390
    %v429 = vadd.f32 %v428, %v400
    %v430 = vadd.f32 %v429, %v410
    %v431 = vrot.slane %v430, 4
    %v432 = vadd.f32 %v430, %v431
    %v433 = vrot.slane %v432, 2
    %v434 = vadd.f32 %v432, %v433
    %v435 = vrot.slane %v434, 1
    %v436 = vadd.f32 %v434, %v435
    %v437 = vadd.f32 %v381, %v391
    %v438 = vadd.f32 %v437, %v401
    %v439 = vadd.f32 %v438, %v411
    %v440 = vrot.slane %v439, 4
    %v441 = vadd.f32 %v439, %v440
    %v442 = vrot.slane %v441, 2
    %v443 = vadd.f32 %v441, %v442
    %v444 = vrot.slane %v443, 1
    %v445 = vadd.f32 %v443, %v444
    %v446 = vadd.f32 %v382, %v392
    %v447 = vadd.f32 %v446, %v402
    %v448 = vadd.f32 %v447, %v412
    %v449 = vrot.slane %v448, 4
    %v450 = vadd.f32 %v448, %v449
    %v451 = vrot.slane %v450, 2
    %v452 = vadd.f32 %v450, %v451
    %v453 = vrot.slane %v452, 1
    %v454 = vadd.f32 %v452, %v453
    %v455 = vadd.f32 %v383, %v393
    %v456 = vadd.f32 %v455, %v403
    %v457 = vadd.f32 %v456, %v413
    %v458 = vrot.slane %v457, 4
    %v459 = vadd.f32 %v457, %v458
    %v460 = vrot.slane %v459, 2
    %v461 = vadd.f32 %v459, %v460
    %v462 = vrot.slane %v461, 1
    %v463 = vadd.f32 %v461, %v462
    %v464 = vadd.f32 %v384, %v394
    %v465 = vadd.f32 %v464, %v404
    %v466 = vadd.f32 %v465, %v414
    %v467 = vrot.slane %v466, 4
    %v468 = vadd.f32 %v466, %v467
    %v469 = vrot.slane %v468, 2
    %v470 = vadd.f32 %v468, %v469
    %v471 = vrot.slane %v470, 1
    %v472 = vadd.f32 %v470, %v471
    %v473 = vadd.f32 %v385, %v395
    %v474 = vadd.f32 %v473, %v405
    %v475 = vadd.f32 %v474, %v415
    %v476 = vrot.slane %v475, 4
    %v477 = vadd.f32 %v475, %v476
    %v478 = vrot.slane %v477, 2
    %v479 = vadd.f32 %v477, %v478
    %v480 = vrot.slane %v479, 1
    %v481 = vadd.f32 %v479, %v480
    %v482 = vadd.f32 %v386, %v396
    %v483 = vadd.f32 %v482, %v406
    %v484 = vadd.f32 %v483, %v416
    %v485 = vrot.slane %v484, 4
    %v486 = vadd.f32 %v484, %v485
    %v487 = vrot.slane %v486, 2
    %v488 = vadd.f32 %v486, %v487
    %v489 = vrot.slane %v488, 1
    %v490 = vadd.f32 %v488, %v489
    %v491 = vadd.f32 %v387, %v397
    %v492 = vadd.f32 %v491, %v407
    %v493 = vadd.f32 %v492, %v417
    %v494 = vrot.slane %v493, 4
    %v495 = vadd.f32 %v493, %v494
    %v496 = vrot.slane %v495, 2
    %v497 = vadd.f32 %v495, %v496
    %v498 = vrot.slane %v497, 1
    %v499 = vadd.f32 %v497, %v498
    %v500 = vadd.f32 %v388, %v398
    %v501 = vadd.f32 %v500, %v408
    %v502 = vadd.f32 %v501, %v418
    %v503 = vrot.slane %v502, 4
    %v504 = vadd.f32 %v502, %v503
    %v505 = vrot.slane %v504, 2
    %v506 = vadd.f32 %v504, %v505
    %v507 = vrot.slane %v506, 1
    %v508 = vadd.f32 %v506, %v507
    %v519 = vrot.slane %v436, 7
    %v520 = vrot.slane %v445, 6
    %v521 = vrot.slane %v454, 5
    %v522 = vrot.slane %v463, 4
    %v523 = vrot.slane %v472, 3
    %v524 = vrot.slane %v481, 2
    %v525 = vrot.slane %v490, 1
    %v526 = vrot.slane %v508, 7
    %vm527 = vcmask 1040384
    %v528 = vsel %vm527, %v427, %v519
    %vm529 = vcmask 1042434
    %v530 = vsel %vm529, %v520, %v521
    %vm531 = vcmask 1041408
    %v532 = vsel %vm531, %v528, %v530
    %vm533 = vcmask 1044484
    %v534 = vsel %vm533, %v522, %v523
    %vm535 = vcmask 1046534
    %v536 = vsel %vm535, %v524, %v525
    %vm537 = vcmask 1045508
    %v538 = vsel %vm537, %v534, %v536
    %v539 = vsel %vm94, %v532, %v538
    %v540 = vsel %vm527, %v499, %v526
    %543 = vst [vmem:[#allocation2] sm:$0xff] %v539
    %v544 = vlaneseq
    %vm545 = vcmp.ge.s32.totalorder %v544, 0
    %vm546 = vcmp.lt.s32.totalorder %v544, 256
    %vm547 = vmand %vm545, %vm546
    %548 = vst.msk [vmem:[#allocation2 + $0x8] sm:$0x3] %vm547, %v540
    // Predicated region
    $region18: #{committor_forward.1} parent=1 // pred_check
      _
    $region19: #{committor_forward.1} parent=1 // pred_check_branch
      %550 = sbr.rel (0) target = $region21
    $region20: #{committor_forward.1} parent=1 // pred_region
      %552 = vsyncadd [#allocation3], 0
      %s554 = sshll.u32 [#allocation2], 4
      %s555 = int_to_ptr.vmem [resolvable:$true] %s554
      %s556 = sshll.u32 %s4, 4
      %s557 = int_to_ptr.hbm [resolvable:$true] %s556
      %559 = dma.vmem_to_hbm [thread:$0]  %s555, 160, %s557, [#allocation3]
    $region21: #{committor_forward.1} parent=1 // pred_fallthru
      _
    // Predicated region
    $region22: #{committor_forward.1} parent=1 // pred_check
      _
    $region23: #{committor_forward.1} parent=1 // pred_check_branch
      %561 = sbr.rel (0) target = $region25
    $region24: #{committor_forward.1} parent=1 // pred_region
      %563 = dma.done [#allocation3], 160
    $region25: #{committor_forward.1} parent=1 // pred_fallthru
      _
    %564 = vsyncpa [#allocation3], 1

</llo_original>
